<compile_context>
chip_gen: v7x
topology: tpu7x:2x2x1
jax: 0.10.0
libtpu: 0.0.40
codegen_flags: <defaults>
</compile_context>

<pallas_src>
import functools

import jax
import jax.numpy as jnp
from jax.experimental import pallas as pl
from jax.experimental.pallas import tpu as pltpu

EPS = 1e-5
_INV_SQRT2 = 0.7071067811865475
_SQRT_2_OVER_PI = 0.7978845608028654


def _gelu(v, approx):
    if approx:
        # tanh formulation -> EUP (separate VLIW slot), cheap next to the MXU.
        return 0.5 * v * (1.0 + jnp.tanh(_SQRT_2_OVER_PI * (v + 0.044715 * v * v * v)))
    # PyTorch nn.GELU() default: exact erf formulation (verification path).
    return 0.5 * v * (1.0 + jax.lax.erf(v * _INV_SQRT2))


# --------------------------- phase 1: token mixing ---------------------------
# Tile over dim2 (lane axis); full dim1 per tile. Computes (natural layout)
#   x2 = x + W1b @ gelu(W1a' @ ((x - mu) * rstd) + b1a') + b1b
# (LN1 gamma/beta already folded into W1a'/b1a') plus the column-wise LN2
# statistics of x2 needed by phase 2.
def _phase1_kernel(x_ref, w1a_ref, b1a_ref, w1b_ref, b1b_ref,
                   x2_ref, mu2_ref, rstd2_ref, *, compute_dtype, approx_gelu):
    x = x_ref[...].astype(jnp.float32)                       # (d1, tn2)

    # LayerNorm over the dim1 (sublane) axis; fused single pass.
    mu = jnp.mean(x, axis=0, keepdims=True)
    ex2 = jnp.mean(x * x, axis=0, keepdims=True)
    rstd = jax.lax.rsqrt(ex2 - mu * mu + EPS)
    y = (x - mu) * rstd                                      # affine folded into W1a'

    # Token-mixing MLP over dim1 as a left multiply (compute_dtype in, f32 acc).
    h = jnp.dot(w1a_ref[...], y.astype(compute_dtype),
                preferred_element_type=jnp.float32) + b1a_ref[...]
    h = _gelu(h, approx_gelu)
    y = jnp.dot(w1b_ref[...], h.astype(compute_dtype),
                preferred_element_type=jnp.float32) + b1b_ref[...]

    x2 = x + y
    x2_ref[...] = x2.astype(x2_ref.dtype)

    # LN2 statistics (reduction over dim1); phase 2 tiles over dim1 and cannot
    # compute them itself.
    mu2 = jnp.mean(x2, axis=0, keepdims=True)
    ex22 = jnp.mean(x2 * x2, axis=0, keepdims=True)
    mu2_ref[...] = mu2
    rstd2_ref[...] = jax.lax.rsqrt(ex22 - mu2 * mu2 + EPS)


# -------------------------- phase 2: channel mixing --------------------------
# Grid = (dim1 // tn1, dim2 // tk).  The hidden dim of MLP2 (= dim2) is tiled
# along the second ("arbitrary") grid axis so the (dim2, dim2) weights are
# streamed in (dim2, tk) / (tk, dim2) slabs instead of living whole in VMEM.
#   out = x2 + gelu(LN2(x2) @ W2a^T + b2a) @ W2b^T + b2b
def _phase2_kernel(x2_ref, mu_ref, rstd_ref, gamma_ref, beta_ref,
                   w2a_t_ref, b2a_ref, w2b_t_ref, b2b_ref, out_ref,
                   y2_ref, acc_ref, *, compute_dtype, approx_gelu):
    k = pl.program_id(1)

    @pl.when(k == 0)
    def _init():
        x2 = x2_ref[...].astype(jnp.float32)                 # (tn1, d2)
        y2 = (x2 - mu_ref[...]) * rstd_ref[...] * gamma_ref[...] + beta_ref[...]
        y2_ref[...] = y2.astype(compute_dtype)               # reused across k
        acc_ref[...] = x2                                     # residual in the acc

    # Hidden slab k: (tn1, tk) = full-contraction matmul over dim2.
    h = jnp.dot(y2_ref[...], w2a_t_ref[...],
                preferred_element_type=jnp.float32) + b2a_ref[...]
    h = _gelu(h, approx_gelu)
    # Accumulate this slab's contribution to the output (contraction over tk).
    acc_ref[...] += jnp.dot(h.astype(compute_dtype), w2b_t_ref[...],
                            preferred_element_type=jnp.float32)

    @pl.when(k == pl.num_programs(1) - 1)
    def _finalize():
        out_ref[...] = (acc_ref[...] + b2b_ref[...]).astype(out_ref.dtype)


# ------------------------------ tile selection --------------------------------
def _pick_tile(full, target, quantum):
    """Largest multiple-of-`quantum` divisor of `full` that is <= min(target,
    full//2), so the grid has >=2 steps (pipelining + megacore). Else `full`."""
    if full % quantum != 0 or full < 2 * quantum:
        return full
    cap = min(target, full // 2)
    t = (cap // quantum) * quantum
    while t >= quantum:
        if full % t == 0:
            return t
        t -= quantum
    return full


def _pick_k_tile(full, target):
    """Multiple-of-128 divisor of `full` no larger than target, else `full`."""
    if full <= target or full % 128 != 0:
        return full
    t = (target // 128) * 128
    while t >= 128:
        if full % t == 0:
            return t
        t -= 128
    return full


def _default_vmem_limit():
    try:
        cap = pltpu.get_tpu_info().vmem_capacity_bytes
        return int(max(32 * 1024 * 1024, min(cap * 3 // 4, 96 * 1024 * 1024)))
    except Exception:
        return 48 * 1024 * 1024


# --------------------------- parameter preparation ----------------------------
def prepare_mixer_params(params, compute_dtype=jnp.bfloat16):
    """One-time (off the hot path) transpose / cast / LN-fold of the weights."""
    gamma, beta, w1a, b1a, w1b, b1b, w2a, b2a, w2b, b2b = params
    f32 = jnp.float32
    dim1 = w1a.shape[0]
    dim2 = w2a.shape[0]

    gamma = gamma.astype(f32)
    beta = beta.astype(f32)
    w1a = w1a.astype(f32)
    b1a = b1a.astype(f32)

    # Fold the (shared) LN affine into the token-mixing MLP's first layer
    # (left-multiply form):  W1a @ (g*n + b) + b1a == (W1a*g) @ n + (b1a + W1a@b)
    w1a_f = (w1a * gamma[None, :]).astype(compute_dtype)
    b1a_f = (b1a + w1a @ beta).reshape(dim1, 1)

    return dict(
        compute_dtype=jnp.dtype(compute_dtype),
        gamma=gamma.reshape(dim1, 1),
        beta=beta.reshape(dim1, 1),
        w1a=w1a_f,
        b1a=b1a_f,
        w1b=w1b.astype(compute_dtype),
        b1b=b1b.reshape(dim1, 1).astype(f32),
        w2a_t=w2a.T.astype(compute_dtype),          # (in=dim2, hidden=dim2)
        b2a=b2a.reshape(1, dim2).astype(f32),
        w2b_t=w2b.T.astype(compute_dtype),          # (hidden=dim2, out=dim2)
        b2b=b2b.reshape(1, dim2).astype(f32),
    )


# ---------------------------------- wrapper -----------------------------------
def mixer_block(x, prep, *, block_d2=512, block_d1=256, block_k=512,
                approx_gelu=True, vmem_limit_bytes=None):
    """x: (dim1, dim2). prep: output of prepare_mixer_params. Returns (dim1, dim2)."""
    dim1, dim2 = x.shape
    f32 = jnp.float32
    compute_dtype = prep["compute_dtype"]
    c_isz = jnp.dtype(compute_dtype).itemsize
    # bf16 inter-phase x2 halves the HBM round trip; keep f32 for verification.
    inter_dtype = f32 if compute_dtype == jnp.dtype(jnp.float32) else jnp.bfloat16
    if vmem_limit_bytes is None:
        vmem_limit_bytes = _default_vmem_limit()

    const0_1 = lambda j: (0, 0)

    # -------- phase 1: token mixing, tiled over dim2 (lane axis) --------
    tn2 = _pick_tile(dim2, block_d2, 128)
    p1_flops = 4 * dim1 * dim1 * dim2
    p1_bytes = (dim1 * dim2 * (x.dtype.itemsize + jnp.dtype(inter_dtype).itemsize)
                + 2 * dim1 * dim1 * c_isz + 3 * dim1 * 4 + 2 * dim2 * 4)
    x2, mu2, rstd2 = pl.pallas_call(
        functools.partial(_phase1_kernel, compute_dtype=compute_dtype,
                          approx_gelu=approx_gelu),
        out_shape=(
            jax.ShapeDtypeStruct((dim1, dim2), inter_dtype),
            jax.ShapeDtypeStruct((1, dim2), f32),
            jax.ShapeDtypeStruct((1, dim2), f32),
        ),
        grid=(dim2 // tn2,),
        in_specs=[
            pl.BlockSpec((dim1, tn2), lambda j: (0, j)),   # x tile
            pl.BlockSpec((dim1, dim1), const0_1),          # W1a' (VMEM-resident)
            pl.BlockSpec((dim1, 1), const0_1),             # b1a'
            pl.BlockSpec((dim1, dim1), const0_1),          # W1b  (VMEM-resident)
            pl.BlockSpec((dim1, 1), const0_1),             # b1b
        ],
        out_specs=(
            pl.BlockSpec((dim1, tn2), lambda j: (0, j)),   # x2 tile
            pl.BlockSpec((1, tn2), lambda j: (0, j)),      # mean(LN2)
            pl.BlockSpec((1, tn2), lambda j: (0, j)),      # rstd(LN2)
        ),
        compiler_params=pltpu.CompilerParams(
            dimension_semantics=("parallel",),
            vmem_limit_bytes=vmem_limit_bytes),
        cost_estimate=pl.CostEstimate(flops=p1_flops,
                                      transcendentals=dim1 * dim2,
                                      bytes_accessed=p1_bytes),
    )(x, prep["w1a"], prep["b1a"], prep["w1b"], prep["b1b"])

    # -------- phase 2: channel mixing, tiled over dim1 and the hidden dim --------
    tn1 = _pick_tile(dim1, block_d1, 8)
    tk = _pick_k_tile(dim2, block_k)
    p2_flops = 4 * dim1 * dim2 * dim2
    p2_bytes = (dim1 * dim2 * (jnp.dtype(inter_dtype).itemsize + x.dtype.itemsize)
                + 2 * dim2 * dim2 * c_isz + 2 * dim1 * 4 + 4 * dim2 * 4)
    out = pl.pallas_call(
        functools.partial(_phase2_kernel, compute_dtype=compute_dtype,
                          approx_gelu=approx_gelu),
        out_shape=jax.ShapeDtypeStruct((dim1, dim2), x.dtype),
        grid=(dim1 // tn1, dim2 // tk),
        in_specs=[
            pl.BlockSpec((tn1, dim2), lambda i, k: (i, 0)),   # x2 tile (held over k)
            pl.BlockSpec((1, dim2), lambda i, k: (0, 0)),     # mean(LN2)
            pl.BlockSpec((1, dim2), lambda i, k: (0, 0)),     # rstd(LN2)
            pl.BlockSpec((tn1, 1), lambda i, k: (i, 0)),      # gamma slice
            pl.BlockSpec((tn1, 1), lambda i, k: (i, 0)),      # beta slice
            pl.BlockSpec((dim2, tk), lambda i, k: (0, k)),    # W2a^T K-slab
            pl.BlockSpec((1, tk), lambda i, k: (0, k)),       # b2a K-slab
            pl.BlockSpec((tk, dim2), lambda i, k: (k, 0)),    # W2b^T K-slab
            pl.BlockSpec((1, dim2), lambda i, k: (0, 0)),     # b2b
        ],
        out_specs=pl.BlockSpec((tn1, dim2), lambda i, k: (i, 0)),
        scratch_shapes=[
            pltpu.VMEM((tn1, dim2), compute_dtype),           # y2 (normalized x2)
            pltpu.VMEM((tn1, dim2), jnp.float32),             # f32 accumulator
        ],
        compiler_params=pltpu.CompilerParams(
            dimension_semantics=("parallel", "arbitrary"),
            vmem_limit_bytes=vmem_limit_bytes),
        cost_estimate=pl.CostEstimate(flops=p2_flops,
                                      transcendentals=dim1 * dim2,
                                      bytes_accessed=p2_bytes),
    )(x2, mu2, rstd2, prep["gamma"], prep["beta"],
      prep["w2a_t"], prep["b2a"], prep["w2b_t"], prep["b2b"])

    return out


# ------------------------------ pure-JAX reference ------------------------------
def mixer_block_reference(x, params):
    """Mirrors the PyTorch MixerBlock.forward exactly (f32, exact-erf GELU,
    shared LayerNorm used before both MLPs)."""
    gamma, beta, w1a, b1a, w1b, b1b, w2a, b2a, w2b, b2b = params

    def ln(v):
        mu = jnp.mean(v, -1, keepdims=True)
        var = jnp.mean((v - mu) ** 2, -1, keepdims=True)
        return (v - mu) / jnp.sqrt(var + EPS) * gamma + beta

    def mlp(v, wa, ba, wb, bb):
        return _gelu(v @ wa.T + ba, approx=False) @ wb.T + bb

    xt = x.T                                              # (dim2, dim1)
    xt = xt + mlp(ln(xt), w1a, b1a, w1b, b1b)
    z = mlp(ln(xt).T, w2a, b2a, w2b, b2b)
    xt = xt + z.T
    return xt.T


if __name__ == "__main__":
    # Small deterministic test. dim2 multiple of 128 -> lane-dense blocks; the
    # explicit block targets force multi-step grids on every axis (3 tiles in
    # phase 1, 2 x 3 grid in phase 2) so pipelining/accumulation is exercised.
    dim1, dim2 = 64, 384
    key = jax.random.PRNGKey(0)
    ks = jax.random.split(key, 12)

    x = jax.random.normal(ks[0], (dim1, dim2), dtype=jnp.float32)
    params = (
        1.0 + 0.1 * jax.random.normal(ks[1], (dim1,), jnp.float32),   # LN gamma (shared)
        0.1 * jax.random.normal(ks[2], (dim1,), jnp.float32),         # LN beta  (shared)
        0.2 * jax.random.normal(ks[3], (dim1, dim1), jnp.float32),    # MLP1 W_a
        0.1 * jax.random.normal(ks[4], (dim1,), jnp.float32),         # MLP1 b_a
        0.2 * jax.random.normal(ks[5], (dim1, dim1), jnp.float32),    # MLP1 W_b
        0.1 * jax.random.normal(ks[6], (dim1,), jnp.float32),         # MLP1 b_b
        0.2 * jax.random.normal(ks[7], (dim2, dim2), jnp.float32),    # MLP2 W_a
        0.1 * jax.random.normal(ks[8], (dim2,), jnp.float32),         # MLP2 b_a
        0.2 * jax.random.normal(ks[9], (dim2, dim2), jnp.float32),    # MLP2 W_b
        0.1 * jax.random.normal(ks[10], (dim2,), jnp.float32),        # MLP2 b_b
    )

    ref = jax.block_until_ready(mixer_block_reference(x, params))

    # 1) bit-close structural check: f32 matmuls, exact-erf GELU, f32 x2.
    prep_f32 = prepare_mixer_params(params, compute_dtype=jnp.float32)
    out_f32 = jax.block_until_ready(
        mixer_block(x, prep_f32, block_d2=128, block_d1=32, block_k=128,
                    approx_gelu=False))
    assert out_f32.shape == (dim1, dim2)
    err_f32 = float(jnp.max(jnp.abs(out_f32 - ref)))
    assert jnp.allclose(out_f32, ref, rtol=1e-3, atol=1e-3), err_f32

    # 2) production config: bf16 matmul operands / f32 accumulation, tanh-approx
    #    GELU, bf16 inter-phase x2.
    prep = prepare_mixer_params(params, compute_dtype=jnp.bfloat16)
    out = jax.block_until_ready(
        mixer_block(x, prep, block_d2=128, block_d1=32, block_k=128))
    assert out.shape == (dim1, dim2)
    err = float(jnp.max(jnp.abs(out - ref)))
    scale = float(jnp.max(jnp.abs(ref)))
    assert err <= 2.5e-2 * scale, (err, scale)

    print("KERNEL_OK")
</pallas_src>

<mosaic_0001>
module attributes {stable_mosaic.version = 11 : i64} {
  func.func @_phase1_kernel(%arg0: i32, %arg1: memref<64x128xf32, #tpu.memory_space<vmem>>, %arg2: memref<64x64xf32, #tpu.memory_space<vmem>>, %arg3: memref<64x1xf32, #tpu.memory_space<vmem>>, %arg4: memref<64x64xf32, #tpu.memory_space<vmem>>, %arg5: memref<64x1xf32, #tpu.memory_space<vmem>>, %arg6: memref<64x128xf32, #tpu.memory_space<vmem>>, %arg7: memref<1x128xf32, #tpu.memory_space<vmem>>, %arg8: memref<1x128xf32, #tpu.memory_space<vmem>>) attributes {dimension_semantics = [#tpu.dimension_semantics<parallel>], iteration_bounds = array<i64: 3>, scalar_prefetch = 0 : i64, scratch_operands = 0 : i64, tpu.core_type = #tpu.core_type<tc>, window_params = [{transform_indices = @transform_0, window_bounds = array<i64: 64, 128>}, {pipeline_mode = #tpu.pipeline_mode<synchronous>, transform_indices = @transform_1, window_bounds = array<i64: 64, 64>}, {pipeline_mode = #tpu.pipeline_mode<synchronous>, transform_indices = @transform_2, window_bounds = array<i64: 64, 1>}, {pipeline_mode = #tpu.pipeline_mode<synchronous>, transform_indices = @transform_3, window_bounds = array<i64: 64, 64>}, {pipeline_mode = #tpu.pipeline_mode<synchronous>, transform_indices = @transform_4, window_bounds = array<i64: 64, 1>}, {transform_indices = @transform_5, window_bounds = array<i64: 64, 128>}, {transform_indices = @transform_6, window_bounds = array<i64: 1, 128>}, {transform_indices = @transform_7, window_bounds = array<i64: 1, 128>}]} {
    %c0 = arith.constant 0 : index
    %c0_0 = arith.constant 0 : index
    %0 = vector.load %arg1[%c0, %c0_0] : memref<64x128xf32, #tpu.memory_space<vmem>>, vector<64x128xf32>
    %cst = arith.constant dense<0.000000e+00> : vector<128xf32>
    %1 = vector.multi_reduction <add>, %0, %cst [0] : vector<64x128xf32> to vector<128xf32>
    %2 = vector.shape_cast %1 : vector<128xf32> to vector<1x128xf32>
    %cst_1 = arith.constant 6.400000e+01 : f32
    %3 = vector.broadcast %cst_1 : f32 to vector<1x128xf32>
    %4 = arith.divf %2, %3 : vector<1x128xf32>
    %5 = arith.mulf %0, %0 : vector<64x128xf32>
    %cst_2 = arith.constant dense<0.000000e+00> : vector<128xf32>
    %6 = vector.multi_reduction <add>, %5, %cst_2 [0] : vector<64x128xf32> to vector<128xf32>
    %7 = vector.shape_cast %6 : vector<128xf32> to vector<1x128xf32>
    %cst_3 = arith.constant 6.400000e+01 : f32
    %8 = vector.broadcast %cst_3 : f32 to vector<1x128xf32>
    %9 = arith.divf %7, %8 : vector<1x128xf32>
    %10 = arith.mulf %4, %4 : vector<1x128xf32>
    %11 = arith.subf %9, %10 : vector<1x128xf32>
    %cst_4 = arith.constant 9.99999974E-6 : f32
    %12 = vector.broadcast %cst_4 : f32 to vector<1x128xf32>
    %13 = arith.addf %11, %12 : vector<1x128xf32>
    %14 = math.rsqrt %13 : vector<1x128xf32>
    %15 = vector.broadcast %4 : vector<1x128xf32> to vector<64x128xf32>
    %16 = arith.subf %0, %15 : vector<64x128xf32>
    %17 = vector.broadcast %14 : vector<1x128xf32> to vector<64x128xf32>
    %18 = arith.mulf %16, %17 : vector<64x128xf32>
    %c0_5 = arith.constant 0 : index
    %c0_6 = arith.constant 0 : index
    %19 = vector.load %arg2[%c0_5, %c0_6] : memref<64x64xf32, #tpu.memory_space<vmem>>, vector<64x64xf32>
    %cst_7 = arith.constant dense<0.000000e+00> : vector<64x128xf32>
    %20 = tpu.matmul %19, %18, %cst_7 {dimension_numbers = #tpu.dot_dimension_numbers<[1], [0], [0], [1], [0, 0, 1, 1], [], []>} : vector<64x64xf32>, vector<64x128xf32>, vector<64x128xf32> -> vector<64x128xf32>
    %c0_8 = arith.constant 0 : index
    %c0_9 = arith.constant 0 : index
    %21 = vector.load %arg3[%c0_8, %c0_9] : memref<64x1xf32, #tpu.memory_space<vmem>>, vector<64x1xf32>
    %22 = vector.broadcast %21 : vector<64x1xf32> to vector<64x128xf32>
    %23 = arith.addf %20, %22 : vector<64x128xf32>
    %cst_10 = arith.constant 5.000000e-01 : f32
    %24 = vector.broadcast %cst_10 : f32 to vector<64x128xf32>
    %25 = arith.mulf %24, %23 : vector<64x128xf32>
    %cst_11 = arith.constant 0.707106769 : f32
    %26 = vector.broadcast %cst_11 : f32 to vector<64x128xf32>
    %27 = arith.mulf %23, %26 : vector<64x128xf32>
    %28 = math.erf %27 : vector<64x128xf32>
    %cst_12 = arith.constant 1.000000e+00 : f32
    %29 = vector.broadcast %cst_12 : f32 to vector<64x128xf32>
    %30 = arith.addf %29, %28 : vector<64x128xf32>
    %31 = arith.mulf %25, %30 : vector<64x128xf32>
    %c0_13 = arith.constant 0 : index
    %c0_14 = arith.constant 0 : index
    %32 = vector.load %arg4[%c0_13, %c0_14] : memref<64x64xf32, #tpu.memory_space<vmem>>, vector<64x64xf32>
    %cst_15 = arith.constant dense<0.000000e+00> : vector<64x128xf32>
    %33 = tpu.matmul %32, %31, %cst_15 {dimension_numbers = #tpu.dot_dimension_numbers<[1], [0], [0], [1], [0, 0, 1, 1], [], []>} : vector<64x64xf32>, vector<64x128xf32>, vector<64x128xf32> -> vector<64x128xf32>
    %c0_16 = arith.constant 0 : index
    %c0_17 = arith.constant 0 : index
    %34 = vector.load %arg5[%c0_16, %c0_17] : memref<64x1xf32, #tpu.memory_space<vmem>>, vector<64x1xf32>
    %35 = vector.broadcast %34 : vector<64x1xf32> to vector<64x128xf32>
    %36 = arith.addf %33, %35 : vector<64x128xf32>
    %37 = arith.addf %0, %36 : vector<64x128xf32>
    %c0_18 = arith.constant 0 : index
    %c0_19 = arith.constant 0 : index
    %38 = vector.load %arg6[%c0_18, %c0_19] : memref<64x128xf32, #tpu.memory_space<vmem>>, vector<64x128xf32>
    tpu.vector_store %arg6[%c0_18, %c0_19], %37 {strides = array<i32>} : memref<64x128xf32, #tpu.memory_space<vmem>>, vector<64x128xf32>,
    %cst_20 = arith.constant dense<0.000000e+00> : vector<128xf32>
    %39 = vector.multi_reduction <add>, %37, %cst_20 [0] : vector<64x128xf32> to vector<128xf32>
    %40 = vector.shape_cast %39 : vector<128xf32> to vector<1x128xf32>
    %cst_21 = arith.constant 6.400000e+01 : f32
    %41 = vector.broadcast %cst_21 : f32 to vector<1x128xf32>
    %42 = arith.divf %40, %41 : vector<1x128xf32>
    %43 = arith.mulf %37, %37 : vector<64x128xf32>
    %cst_22 = arith.constant dense<0.000000e+00> : vector<128xf32>
    %44 = vector.multi_reduction <add>, %43, %cst_22 [0] : vector<64x128xf32> to vector<128xf32>
    %45 = vector.shape_cast %44 : vector<128xf32> to vector<1x128xf32>
    %cst_23 = arith.constant 6.400000e+01 : f32
    %46 = vector.broadcast %cst_23 : f32 to vector<1x128xf32>
    %47 = arith.divf %45, %46 : vector<1x128xf32>
    %c0_24 = arith.constant 0 : index
    %c0_25 = arith.constant 0 : index
    %48 = vector.load %arg7[%c0_24, %c0_25] : memref<1x128xf32, #tpu.memory_space<vmem>>, vector<1x128xf32>
    tpu.vector_store %arg7[%c0_24, %c0_25], %42 {strides = array<i32>} : memref<1x128xf32, #tpu.memory_space<vmem>>, vector<1x128xf32>,
    %49 = arith.mulf %42, %42 : vector<1x128xf32>
    %50 = arith.subf %47, %49 : vector<1x128xf32>
    %cst_26 = arith.constant 9.99999974E-6 : f32
    %51 = vector.broadcast %cst_26 : f32 to vector<1x128xf32>
    %52 = arith.addf %50, %51 : vector<1x128xf32>
    %53 = math.rsqrt %52 : vector<1x128xf32>
    %c0_27 = arith.constant 0 : index
    %c0_28 = arith.constant 0 : index
    %54 = vector.load %arg8[%c0_27, %c0_28] : memref<1x128xf32, #tpu.memory_space<vmem>>, vector<1x128xf32>
    tpu.vector_store %arg8[%c0_27, %c0_28], %53 {strides = array<i32>} : memref<1x128xf32, #tpu.memory_space<vmem>>, vector<1x128xf32>,
    return
  }
  func.func @transform_0(%arg0: i32) -> (i32, i32) {
    %c0_i32 = arith.constant 0 : i32
    %c0_i32_0 = arith.constant 0 : i32
    return %c0_i32, %arg0 : i32, i32
  }
  func.func @transform_1(%arg0: i32) -> (i32, i32) {
    %c0_i32 = arith.constant 0 : i32
    %c0_i32_0 = arith.constant 0 : i32
    %c0_i32_1 = arith.constant 0 : i32
    return %c0_i32, %c0_i32_0 : i32, i32
  }
  func.func @transform_2(%arg0: i32) -> (i32, i32) {
    %c0_i32 = arith.constant 0 : i32
    %c0_i32_0 = arith.constant 0 : i32
    %c0_i32_1 = arith.constant 0 : i32
    return %c0_i32, %c0_i32_0 : i32, i32
  }
  func.func @transform_3(%arg0: i32) -> (i32, i32) {
    %c0_i32 = arith.constant 0 : i32
    %c0_i32_0 = arith.constant 0 : i32
    %c0_i32_1 = arith.constant 0 : i32
    return %c0_i32, %c0_i32_0 : i32, i32
  }
  func.func @transform_4(%arg0: i32) -> (i32, i32) {
    %c0_i32 = arith.constant 0 : i32
    %c0_i32_0 = arith.constant 0 : i32
    %c0_i32_1 = arith.constant 0 : i32
    return %c0_i32, %c0_i32_0 : i32, i32
  }
  func.func @transform_5(%arg0: i32) -> (i32, i32) {
    %c0_i32 = arith.constant 0 : i32
    %c0_i32_0 = arith.constant 0 : i32
    return %c0_i32, %arg0 : i32, i32
  }
  func.func @transform_6(%arg0: i32) -> (i32, i32) {
    %c0_i32 = arith.constant 0 : i32
    %c0_i32_0 = arith.constant 0 : i32
    return %c0_i32, %arg0 : i32, i32
  }
  func.func @transform_7(%arg0: i32) -> (i32, i32) {
    %c0_i32 = arith.constant 0 : i32
    %c0_i32_0 = arith.constant 0 : i32
    return %c0_i32, %arg0 : i32, i32
  }
}

</mosaic_0001>

<llo_original>
// kernel: tpu_custom_call.1
$region0: #{tpu_custom_call.1}
  #allocation0 [shape = 'u32[]', space=smem, size = 0x4, offset = 0x4, fixed_abs, tag = 'smem constant byte address 0x4 - core index']
  #allocation1 [shape = 'u32[144,128]{1,0:T(1,128)}', space=vmem, size = 0x12000, scoped, tag = 'internal scratch']
  %s0 = inlined_call_operand.hbm [shape: f32[64,384], index: 0, kind: input, shape index: {}]
  %s1 = inlined_call_operand.vmem [shape: f32[64,64], index: 1, kind: input, shape index: {}]
  %s2 = inlined_call_operand.vmem [shape: f32[64,1], index: 2, kind: input, shape index: {}]
  %s3 = inlined_call_operand.vmem [shape: f32[64,64], index: 3, kind: input, shape index: {}]
  %s4 = inlined_call_operand.vmem [shape: f32[64,1], index: 4, kind: input, shape index: {}]
  %s5 = inlined_call_operand.hbm [shape: f32[64,384], index: 5, kind: output, shape index: {0}]
  %s6 = inlined_call_operand.hbm [shape: f32[1,384], index: 6, kind: output, shape index: {1}]
  %s7 = inlined_call_operand.hbm [shape: f32[1,384], index: 7, kind: output, shape index: {2}]
  %8 = xla_tuple %s5, %s6, %s7
  %s9 = sld [smem:[#allocation0]]
  $region73: #{tpu_custom_call.1} parent=0
    _
  %s11 = ssub.s32 1, %s9
  %s12 = scalar_select 0, %s11, %s9
  $region1: #{tpu_custom_call.1} parent=0
    #allocation2 [shape = 'u8[65536]{0}', space=vmem, size = 0x10000, scoped, tag = 'input window, operand 0']
    #allocation3 [shape = 's32[2]{0}', space=sflag, size = 0x8, scoped, tag = 'scoped memory for tpu_custom_call.1']
    #allocation4 [shape = 's32[2]{0}', space=sflag, size = 0x8, scoped, tag = 'scoped memory for tpu_custom_call.1']
    #allocation5 [shape = 'u8[65536]{0}', space=vmem, size = 0x10000, scoped, tag = 'output window, operand 0']
    #allocation6 [shape = 'u8[1024]{0}', space=vmem, size = 0x400, scoped, tag = 'output window, operand 1']
    #allocation7 [shape = 's32[2]{0}', space=sflag, size = 0x8, scoped, tag = 'scoped memory for tpu_custom_call.1']
    #allocation8 [shape = 'u8[1024]{0}', space=vmem, size = 0x400, scoped, tag = 'output window, operand 2']
    %13 = vsyncpa [#allocation3], 0
    %s14 = scalar_lea.sflag [#allocation3], 1
    %15 = vsyncpa %s14, 0
    %16 = vsyncpa [#allocation4], 0
    %s17 = scalar_lea.sflag [#allocation4], 1
    %18 = vsyncpa %s17, 0
    %19 = vsyncpa [#allocation7], 0
    %s20 = scalar_lea.sflag [#allocation7], 1
    %21 = vsyncpa %s20, 0
    loop: start=0, step=1, limit=5
    $region2: #{tpu_custom_call.1} parent=1 // loop_pre_header
      _
    $region3: #{tpu_custom_call.1} parent=1 // loop_header
      %s23 = sphi 0, %s27
      %p24 = scmp.ge.s32.totalorder %s23, 5
      %s33 = sphi 0, %s35
      %s36 = sphi 0, %s33
      %s37 = sphi 0, %s36
      %s53 = sphi 0, %s37
      %s57 = sphi 0, %s57
      %s59 = sphi 0, %s57
      %s60 = sphi 0, %s59
      %s74 = sphi 0, %s60
      %s78 = sphi 0, %s78
      %s80 = sphi 0, %s78
      %s81 = sphi 0, %s80
      %s95 = sphi 0, %s81
      %s99 = sphi 0, %s99
      %s101 = sphi 0, %s99
      %s102 = sphi 0, %s101
      %s116 = sphi 0, %s102
      %s120 = sphi 0, %s120
      %s122 = sphi 0, %s120
      %s123 = sphi 0, %s122
      %s137 = sphi 0, %s123
      %s143 = sphi 0, %s145
      %s146 = sphi 0, %s143
      %s147 = sphi 0, %s146
      %s163 = sphi 0, %s147
      %s169 = sphi 0, %s171
      %s172 = sphi 0, %s169
      %s173 = sphi 0, %s172
      %s189 = sphi 0, %s173
      %s195 = sphi 0, %s197
      %s198 = sphi 0, %s195
      %s199 = sphi 0, %s198
      %s215 = sphi 0, %s199
    $region4: #{tpu_custom_call.1} parent=1 // loop_header_branch
      %26 = sbr.rel (%p24) target = $region8
    $region5: #{tpu_custom_call.1} parent=1 // loop_body
      %s28 = ssub.s32 %s23, 1
      %s29 = ssub.s32 %s23, 2
      %s30 = sadd.s32 %s23, 1
      %s31 = ssub.s32 %s23, %s30
      %p32 = scmp.eq.s32.totalorder %s31, 0
      %s34 = sadd.s32 %s33, 1
      %s35 = scalar_select %p32, %s33, %s34
      %p38 = pneg %p32
      %p39 = scmp.eq.s32.totalorder %s23, 2
      %p40 = por %p38, %p39
      %p41 = scmp.ne.s32.totalorder %s33, %s36
      %p42 = scmp.eq.s32.totalorder %s23, 0
      %p43 = por %p41, %p42
      %p44 = scmp.ne.s32.totalorder %s33, %s36
      %p45 = scmp.eq.s32.totalorder %s28, 2
      %p46 = por %p44, %p45
      %p47 = scmp.ne.s32.totalorder %s36, %s37
      %p48 = scmp.eq.s32.totalorder %s28, 0
      %p49 = por %p47, %p48
      %p50 = scmp.ne.s32.totalorder %s36, %s37
      %p51 = scmp.eq.s32.totalorder %s29, 2
      %p52 = por %p50, %p51
      %p54 = scmp.ne.s32.totalorder %s37, %s53
      %p55 = scmp.eq.s32.totalorder %s29, 0
      %p56 = por %p54, %p55
      %s58 = sadd.s32 %s57, 1
      %p61 = scmp.eq.s32.totalorder %s23, 2
      %p62 = scmp.ne.s32.totalorder %s57, %s59
      %p63 = scmp.eq.s32.totalorder %s23, 0
      %p64 = por %p62, %p63
      %p65 = scmp.ne.s32.totalorder %s57, %s59
      %p66 = scmp.eq.s32.totalorder %s28, 2
      %p67 = por %p65, %p66
      %p68 = scmp.ne.s32.totalorder %s59, %s60
      %p69 = scmp.eq.s32.totalorder %s28, 0
      %p70 = por %p68, %p69
      %p71 = scmp.ne.s32.totalorder %s59, %s60
      %p72 = scmp.eq.s32.totalorder %s29, 2
      %p73 = por %p71, %p72
      %p75 = scmp.ne.s32.totalorder %s60, %s74
      %p76 = scmp.eq.s32.totalorder %s29, 0
      %p77 = por %p75, %p76
      %s79 = sadd.s32 %s78, 1
      %p82 = scmp.eq.s32.totalorder %s23, 2
      %p83 = scmp.ne.s32.totalorder %s78, %s80
      %p84 = scmp.eq.s32.totalorder %s23, 0
      %p85 = por %p83, %p84
      %p86 = scmp.ne.s32.totalorder %s78, %s80
      %p87 = scmp.eq.s32.totalorder %s28, 2
      %p88 = por %p86, %p87
      %p89 = scmp.ne.s32.totalorder %s80, %s81
      %p90 = scmp.eq.s32.totalorder %s28, 0
      %p91 = por %p89, %p90
      %p92 = scmp.ne.s32.totalorder %s80, %s81
      %p93 = scmp.eq.s32.totalorder %s29, 2
      %p94 = por %p92, %p93
      %p96 = scmp.ne.s32.totalorder %s81, %s95
      %p97 = scmp.eq.s32.totalorder %s29, 0
      %p98 = por %p96, %p97
      %s100 = sadd.s32 %s99, 1
      %p103 = scmp.eq.s32.totalorder %s23, 2
      %p104 = scmp.ne.s32.totalorder %s99, %s101
      %p105 = scmp.eq.s32.totalorder %s23, 0
      %p106 = por %p104, %p105
      %p107 = scmp.ne.s32.totalorder %s99, %s101
      %p108 = scmp.eq.s32.totalorder %s28, 2
      %p109 = por %p107, %p108
      %p110 = scmp.ne.s32.totalorder %s101, %s102
      %p111 = scmp.eq.s32.totalorder %s28, 0
      %p112 = por %p110, %p111
      %p113 = scmp.ne.s32.totalorder %s101, %s102
      %p114 = scmp.eq.s32.totalorder %s29, 2
      %p115 = por %p113, %p114
      %p117 = scmp.ne.s32.totalorder %s102, %s116
      %p118 = scmp.eq.s32.totalorder %s29, 0
      %p119 = por %p117, %p118
      %s121 = sadd.s32 %s120, 1
      %p124 = scmp.eq.s32.totalorder %s23, 2
      %p125 = scmp.ne.s32.totalorder %s120, %s122
      %p126 = scmp.eq.s32.totalorder %s23, 0
      %p127 = por %p125, %p126
      %p128 = scmp.ne.s32.totalorder %s120, %s122
      %p129 = scmp.eq.s32.totalorder %s28, 2
      %p130 = por %p128, %p129
      %p131 = scmp.ne.s32.totalorder %s122, %s123
      %p132 = scmp.eq.s32.totalorder %s28, 0
      %p133 = por %p131, %p132
      %p134 = scmp.ne.s32.totalorder %s122, %s123
      %p135 = scmp.eq.s32.totalorder %s29, 2
      %p136 = por %p134, %p135
      %p138 = scmp.ne.s32.totalorder %s123, %s137
      %p139 = scmp.eq.s32.totalorder %s29, 0
      %p140 = por %p138, %p139
      %s141 = ssub.s32 %s23, %s30
      %p142 = scmp.eq.s32.totalorder %s141, 0
      %s144 = sadd.s32 %s143, 1
      %s145 = scalar_select %p142, %s143, %s144
      %p148 = pneg %p142
      %p149 = scmp.eq.s32.totalorder %s23, 2
      %p150 = por %p148, %p149
      %p151 = scmp.ne.s32.totalorder %s143, %s146
      %p152 = scmp.eq.s32.totalorder %s23, 0
      %p153 = por %p151, %p152
      %p154 = scmp.ne.s32.totalorder %s143, %s146
      %p155 = scmp.eq.s32.totalorder %s28, 2
      %p156 = por %p154, %p155
      %p157 = scmp.ne.s32.totalorder %s146, %s147
      %p158 = scmp.eq.s32.totalorder %s28, 0
      %p159 = por %p157, %p158
      %p160 = scmp.ne.s32.totalorder %s146, %s147
      %p161 = scmp.eq.s32.totalorder %s29, 2
      %p162 = por %p160, %p161
      %p164 = scmp.ne.s32.totalorder %s147, %s163
      %p165 = scmp.eq.s32.totalorder %s29, 0
      %p166 = por %p164, %p165
      %s167 = ssub.s32 %s23, %s30
      %p168 = scmp.eq.s32.totalorder %s167, 0
      %s170 = sadd.s32 %s169, 1
      %s171 = scalar_select %p168, %s169, %s170
      %p174 = pneg %p168
      %p175 = scmp.eq.s32.totalorder %s23, 2
      %p176 = por %p174, %p175
      %p177 = scmp.ne.s32.totalorder %s169, %s172
      %p178 = scmp.eq.s32.totalorder %s23, 0
      %p179 = por %p177, %p178
      %p180 = scmp.ne.s32.totalorder %s169, %s172
      %p181 = scmp.eq.s32.totalorder %s28, 2
      %p182 = por %p180, %p181
      %p183 = scmp.ne.s32.totalorder %s172, %s173
      %p184 = scmp.eq.s32.totalorder %s28, 0
      %p185 = por %p183, %p184
      %p186 = scmp.ne.s32.totalorder %s172, %s173
      %p187 = scmp.eq.s32.totalorder %s29, 2
      %p188 = por %p186, %p187
      %p190 = scmp.ne.s32.totalorder %s173, %s189
      %p191 = scmp.eq.s32.totalorder %s29, 0
      %p192 = por %p190, %p191
      %s193 = ssub.s32 %s23, %s30
      %p194 = scmp.eq.s32.totalorder %s193, 0
      %s196 = sadd.s32 %s195, 1
      %s197 = scalar_select %p194, %s195, %s196
      %p200 = pneg %p194
      %p201 = scmp.eq.s32.totalorder %s23, 2
      %p202 = por %p200, %p201
      %p203 = scmp.ne.s32.totalorder %s195, %s198
      %p204 = scmp.eq.s32.totalorder %s23, 0
      %p205 = por %p203, %p204
      %p206 = scmp.ne.s32.totalorder %s195, %s198
      %p207 = scmp.eq.s32.totalorder %s28, 2
      %p208 = por %p206, %p207
      %p209 = scmp.ne.s32.totalorder %s198, %s199
      %p210 = scmp.eq.s32.totalorder %s28, 0
      %p211 = por %p209, %p210
      %p212 = scmp.ne.s32.totalorder %s198, %s199
      %p213 = scmp.eq.s32.totalorder %s29, 2
      %p214 = por %p212, %p213
      %p216 = scmp.ne.s32.totalorder %s199, %s215
      %p217 = scmp.eq.s32.totalorder %s29, 0
      %p218 = por %p216, %p217
      %p219 = scmp.le.s32.totalorder 1, %s23
      %p220 = scmp.lt.s32.totalorder %s23, 4
      %p221 = pnand %p219, %p220
      %p222 = pneg %p221
      // Predicated region
      $region9: #{tpu_custom_call.1} parent=5 // pred_check
        _
      $region10: #{tpu_custom_call.1} parent=5 // pred_check_branch
        %224 = sbr.rel (%p221) target = $region12
      $region11: #{tpu_custom_call.1} parent=5 // pred_region
        %s225 = ssub.s32 %s23, 1
        // Predicated region
        $region13: #{tpu_custom_call.1} parent=11 // pred_check
          %p226 = pneg %p70
        $region14: #{tpu_custom_call.1} parent=11 // pred_check_branch
          %228 = sbr.rel (%p226) target = $region16
        $region15: #{tpu_custom_call.1} parent=11 // pred_region
          _
        $region16: #{tpu_custom_call.1} parent=11 // pred_fallthru
          _
        // Predicated region
        $region17: #{tpu_custom_call.1} parent=11 // pred_check
          %p229 = pneg %p91
        $region18: #{tpu_custom_call.1} parent=11 // pred_check_branch
          %231 = sbr.rel (%p229) target = $region20
        $region19: #{tpu_custom_call.1} parent=11 // pred_region
          _
        $region20: #{tpu_custom_call.1} parent=11 // pred_fallthru
          _
        // Predicated region
        $region21: #{tpu_custom_call.1} parent=11 // pred_check
          %p232 = pneg %p112
        $region22: #{tpu_custom_call.1} parent=11 // pred_check_branch
          %234 = sbr.rel (%p232) target = $region24
        $region23: #{tpu_custom_call.1} parent=11 // pred_region
          _
        $region24: #{tpu_custom_call.1} parent=11 // pred_fallthru
          _
        // Predicated region
        $region25: #{tpu_custom_call.1} parent=11 // pred_check
          %p235 = pneg %p133
        $region26: #{tpu_custom_call.1} parent=11 // pred_check_branch
          %237 = sbr.rel (%p235) target = $region28
        $region27: #{tpu_custom_call.1} parent=11 // pred_region
          _
        $region28: #{tpu_custom_call.1} parent=11 // pred_fallthru
          _
      $region12: #{tpu_custom_call.1} parent=5 // pred_fallthru
        _
      %p238 = scmp.lt.s32.totalorder %s23, 3
      // Predicated region
      $region29: #{tpu_custom_call.1} parent=5 // pred_check
        %p239 = pneg %p238
      $region30: #{tpu_custom_call.1} parent=5 // pred_check_branch
        %241 = sbr.rel (%p239) target = $region32
      $region31: #{tpu_custom_call.1} parent=5 // pred_region
        // Predicated region
        $region33: #{tpu_custom_call.1} parent=31 // pred_check
          %p242 = pneg %p43
        $region34: #{tpu_custom_call.1} parent=31 // pred_check_branch
          %244 = sbr.rel (%p242) target = $region36
        $region35: #{tpu_custom_call.1} parent=31 // pred_region
          %s245 = sand.u32 %s33, 1
          %s246 = scalar_lea.sflag [#allocation3], %s245
          %s247 = sand.u32 %s33, 1
          %s248 = smul.addr %s247, 64
          %s249 = scalar_lea.vmem [#allocation2], %s248
          %s251 = ssub.s32 1024, 1024
          %252 = vsyncadd %s246, %s251
          %s253 = smul.addr %s23, 128
          %s254 = scalar_lea.hbm %s0, %s253
          %s255 = sshll.u32 %s249, 4
          %s256 = int_to_ptr.vmem [resolvable:$true] %s255
          %261 = dma.hbm_to_vmem [thread:$0]  %s254, 1024, %s256, %s246, 384, 128, 8
        $region36: #{tpu_custom_call.1} parent=31 // pred_fallthru
          _
      $region32: #{tpu_custom_call.1} parent=5 // pred_fallthru
        _
      %p262 = scmp.le.s32.totalorder 1, %s23
      %p263 = scmp.lt.s32.totalorder %s23, 4
      %p264 = pnand %p262, %p263
      %p265 = pneg %p264
      // Predicated region
      $region37: #{tpu_custom_call.1} parent=5 // pred_check
        _
      $region38: #{tpu_custom_call.1} parent=5 // pred_check_branch
        %267 = sbr.rel (%p264) target = $region40
      $region39: #{tpu_custom_call.1} parent=5 // pred_region
        %s268 = ssub.s32 %s23, 1
        %s269 = sand.u32 %s36, 1
        %s270 = scalar_lea.sflag [#allocation3], %s269
        %s271 = sand.u32 %s36, 1
        %s272 = smul.addr %s271, 64
        %s273 = scalar_lea.vmem [#allocation2], %s272
        // Predicated region
        $region41: #{tpu_custom_call.1} parent=39 // pred_check
          %p274 = pneg %p49
        $region42: #{tpu_custom_call.1} parent=39 // pred_check_branch
          %276 = sbr.rel (%p274) target = $region44
        $region43: #{tpu_custom_call.1} parent=39 // pred_region
          %277 = dma.done %s270, 1024
        $region44: #{tpu_custom_call.1} parent=39 // pred_fallthru
          _
        %s278 = sand.u32 %s36, 1
        %s279 = scalar_lea.sflag [#allocation3], %s278
        %s280 = sand.u32 %s36, 1
        %s281 = smul.addr %s280, 64
        %s282 = scalar_lea.vmem [#allocation2], %s281
        %p283 = pneg %p49
        %p284 = pneg %p46
        %p285 = pneg %p70
        %p286 = pneg %p67
        %p287 = pneg %p91
        %p288 = pneg %p88
        %p289 = pneg %p112
        %p290 = pneg %p109
        %p291 = pneg %p133
        %p292 = pneg %p130
        %p293 = pneg %p159
        %p294 = pneg %p156
        %s295 = sand.u32 %s146, 1
        %s296 = scalar_lea.sflag [#allocation4], %s295
        %s297 = sand.u32 %s146, 1
        %s298 = smul.addr %s297, 64
        %s299 = scalar_lea.vmem [#allocation5], %s298
        %p300 = pneg %p185
        %p301 = pneg %p182
        %s302 = sand.u32 %s28, 1
        %s303 = scalar_lea.sflag [#allocation7], %s302
        %s304 = sand.u32 %s172, 1
        %s305 = scalar_lea.vmem [#allocation6], %s304
        %p306 = pneg %p211
        %p307 = pneg %p208
        %s308 = sand.u32 %s28, 1
        %s309 = scalar_lea.sflag [#allocation7], %s308
        %s310 = sand.u32 %s198, 1
        %s311 = scalar_lea.vmem [#allocation8], %s310
        %v312 = vld [vmem:[%s273] sm:$0xff]
        %v313 = vld [vmem:[%s273 + $0x8] sm:$0xff]
        %v314 = vld [vmem:[%s273 + $0x10] sm:$0xff]
        %v315 = vld [vmem:[%s273 + $0x18] sm:$0xff]
        %v316 = vld [vmem:[%s273 + $0x20] sm:$0xff]
        %v317 = vld [vmem:[%s273 + $0x28] sm:$0xff]
        %v318 = vld [vmem:[%s273 + $0x30] sm:$0xff]
        %v319 = vld [vmem:[%s273 + $0x38] sm:$0xff]
        %v320 = vadd.f32 %v312, %v313
        %v321 = vadd.f32 %v320, %v314
        %v322 = vadd.f32 %v321, %v315
        %v323 = vadd.f32 %v322, %v316
        %v324 = vadd.f32 %v323, %v317
        %v325 = vadd.f32 %v324, %v318
        %v326 = vadd.f32 %v325, %v319
        %v327 = vrot.slane %v326, 4
        %v328 = vadd.f32 %v326, %v327
        %v329 = vrot.slane %v328, 2
        %v330 = vadd.f32 %v328, %v329
        %v331 = vrot.slane %v330, 1
        %v332 = vadd.f32 %v330, %v331
        %v333 = vrcp.pop 64.0
        %v334 = vmul.f32 %v332, %v333
        %v335 = vmul.f32 %v312, %v312
        %v336 = vmul.f32 %v313, %v313
        %v337 = vmul.f32 %v314, %v314
        %v338 = vmul.f32 %v315, %v315
        %v339 = vmul.f32 %v316, %v316
        %v340 = vmul.f32 %v317, %v317
        %v341 = vmul.f32 %v318, %v318
        %v342 = vmul.f32 %v319, %v319
        %v343 = vadd.f32 %v335, %v336
        %v344 = vadd.f32 %v343, %v337
        %v345 = vadd.f32 %v344, %v338
        %v346 = vadd.f32 %v345, %v339
        %v347 = vadd.f32 %v346, %v340
        %v348 = vadd.f32 %v347, %v341
        %v349 = vadd.f32 %v348, %v342
        %v350 = vrot.slane %v349, 4
        %v351 = vadd.f32 %v349, %v350
        %v352 = vrot.slane %v351, 2
        %v353 = vadd.f32 %v351, %v352
        %v354 = vrot.slane %v353, 1
        %v355 = vadd.f32 %v353, %v354
        %v356 = vmul.f32 %v355, %v333
        %v357 = vmul.f32 %v334, %v334
        %v358 = vsub.f32 %v356, %v357
        %v359 = vadd.f32 %v358, 1e-05
        %v360 = vrsqrt.pop %v359
        %v361 = vsub.f32 %v312, %v334
        %v362 = vsub.f32 %v313, %v334
        %v363 = vsub.f32 %v314, %v334
        %v364 = vsub.f32 %v315, %v334
        %v365 = vsub.f32 %v316, %v334
        %v366 = vsub.f32 %v317, %v334
        %v367 = vsub.f32 %v318, %v334
        %v368 = vsub.f32 %v319, %v334
        %v369 = vmul.f32 %v361, %v360
        %v370 = vmul.f32 %v362, %v360
        %v371 = vmul.f32 %v363, %v360
        %v372 = vmul.f32 %v364, %v360
        %v373 = vmul.f32 %v365, %v360
        %v374 = vmul.f32 %v366, %v360
        %v375 = vmul.f32 %v367, %v360
        %v376 = vmul.f32 %v368, %v360
        %v377 = vld [vmem:[%s1] sm:$0xff]
        %v378 = vld [vmem:[%s1 + $0x8] sm:$0xff]
        %v379 = vld [vmem:[%s1 + $0x10] sm:$0xff]
        %v380 = vld [vmem:[%s1 + $0x18] sm:$0xff]
        %v381 = vld [vmem:[%s1 + $0x20] sm:$0xff]
        %v382 = vld [vmem:[%s1 + $0x28] sm:$0xff]
        %v383 = vld [vmem:[%s1 + $0x30] sm:$0xff]
        %v384 = vld [vmem:[%s1 + $0x38] sm:$0xff]
        %v385 = vld [vmem:[%s2] sm:$0xff]
        %v386 = vld [vmem:[%s2 + $0x8] sm:$0xff]
        %v387 = vld [vmem:[%s2 + $0x10] sm:$0xff]
        %v388 = vld [vmem:[%s2 + $0x18] sm:$0xff]
        %v389 = vld [vmem:[%s2 + $0x20] sm:$0xff]
        %v390 = vld [vmem:[%s2 + $0x28] sm:$0xff]
        %v391 = vld [vmem:[%s2 + $0x30] sm:$0xff]
        %v392 = vld [vmem:[%s2 + $0x38] sm:$0xff]
        %394 = vset.pattern.permute.xlu0 0
        %395 = vperm.xlu0 %394, %v385
        %v396 = vpop.permute.xlu0 %395
        %399 = vset.pattern.permute.xlu0 0
        %400 = vperm.xlu0 %399, %v386
        %v401 = vpop.permute.xlu0 %400
        %404 = vset.pattern.permute.xlu0 0
        %405 = vperm.xlu0 %404, %v387
        %v406 = vpop.permute.xlu0 %405
        %409 = vset.pattern.permute.xlu0 0
        %410 = vperm.xlu0 %409, %v388
        %v411 = vpop.permute.xlu0 %410
        %414 = vset.pattern.permute.xlu0 0
        %415 = vperm.xlu0 %414, %v389
        %v416 = vpop.permute.xlu0 %415
        %419 = vset.pattern.permute.xlu0 0
        %420 = vperm.xlu0 %419, %v390
        %v421 = vpop.permute.xlu0 %420
        %424 = vset.pattern.permute.xlu0 0
        %425 = vperm.xlu0 %424, %v391
        %v426 = vpop.permute.xlu0 %425
        %429 = vset.pattern.permute.xlu0 0
        %430 = vperm.xlu0 %429, %v392
        %v431 = vpop.permute.xlu0 %430
        %vm433 = vcmask 523264
        %v435 = vsel %vm433, %v377, 0
        %v438 = vsel %vm433, %v378, 0
        %v441 = vsel %vm433, %v379, 0
        %v444 = vsel %vm433, %v380, 0
        %v447 = vsel %vm433, %v381, 0
        %v450 = vsel %vm433, %v382, 0
        %v453 = vsel %vm433, %v383, 0
        %v456 = vsel %vm433, %v384, 0
        %458 = vmatprep.subr.mxu0 0.0
        %459 = vmatpush1.msra.mxu0 %v369
        %460 = vmatprep.subr.mxu0 0.0
        %461 = vmatpush1.msra.mxu0 %v370
        %462 = vmatprep.subr.mxu0 0.0
        %463 = vmatpush1.msra.mxu0 %v371
        %464 = vmatprep.subr.mxu0 0.0
        %465 = vmatpush1.msra.mxu0 %v372
        %466 = vmatprep.subr.mxu0 0.0
        %467 = vmatpush1.msra.mxu0 %v373
        %468 = vmatprep.subr.mxu0 0.0
        %469 = vmatpush1.msra.mxu0 %v374
        %470 = vmatprep.subr.mxu0 0.0
        %471 = vmatpush1.msra.mxu0 %v375
        %472 = vmatprep.subr.mxu0 0.0
        %473 = vmatpush1.msra.mxu0 %v376
        %474 = vmatprep.subr.mxu0 0.0
        %475 = vmatpush1.msra.mxu0 0.0
        %476 = vmatprep.subr.mxu0 0.0
        %477 = vmatpush1.msra.mxu0 0.0
        %478 = vmatprep.subr.mxu0 0.0
        %479 = vmatpush1.msra.mxu0 0.0
        %480 = vmatprep.subr.mxu0 0.0
        %481 = vmatpush1.msra.mxu0 0.0
        %482 = vmatprep.subr.mxu0 0.0
        %483 = vmatpush1.msra.mxu0 0.0
        %484 = vmatprep.subr.mxu0 0.0
        %485 = vmatpush1.msra.mxu0 0.0
        %486 = vmatprep.subr.mxu0 0.0
        %487 = vmatpush1.msra.mxu0 0.0
        %488 = vmatprep.subr.mxu0 0.0
        %489 = vmatpush1.msra.mxu0 0.0
        %490 = vmatprep.subr.mxu0 0.0
        %491 = vmatpush1.msra.mxu0 0.0
        %492 = vmatprep.subr.mxu0 0.0
        %493 = vmatpush1.msra.mxu0 0.0
        %494 = vmatprep.subr.mxu0 0.0
        %495 = vmatpush1.msra.mxu0 0.0
        %496 = vmatprep.subr.mxu0 0.0
        %497 = vmatpush1.msra.mxu0 0.0
        %498 = vmatprep.subr.mxu0 0.0
        %499 = vmatpush1.msra.mxu0 0.0
        %500 = vmatprep.subr.mxu0 0.0
        %501 = vmatpush1.msra.mxu0 0.0
        %502 = vmatprep.subr.mxu0 0.0
        %503 = vmatpush1.msra.mxu0 0.0
        %504 = vmatprep.subr.mxu0 0.0
        %505 = vmatpush1.msra.mxu0 0.0
        %506 = vmatprep.subr.mxu0 0.0
        %507 = vmatpush1.msra.mxu0 0.0
        %508 = vmatprep.subr.mxu0 0.0
        %509 = vmatpush1.msra.mxu0 0.0
        %510 = vmatprep.subr.mxu0 0.0
        %511 = vmatpush1.msra.mxu0 0.0
        %512 = vmatprep.subr.mxu0 0.0
        %513 = vmatpush1.msra.mxu0 0.0
        %514 = vmatprep.subr.mxu0 0.0
        %515 = vmatpush1.msra.mxu0 0.0
        %516 = vmatprep.subr.mxu0 0.0
        %517 = vmatpush1.msra.mxu0 0.0
        %518 = vmatprep.subr.mxu0 0.0
        %519 = vmatpush1.msra.mxu0 0.0
        %520 = vmatprep.subr.mxu0 0.0
        %521 = vmatpush1.msra.mxu0 0.0
        %522 = vmatprep.mubr.f32.mxu0 0.0
        %523 = vmatmul.mubr.f32.gmra.mrb[0].mxu0 %v435
        %v524 = vpop.f32.mrb[0].mxu0
        %v525 = vadd.f32 %v396, %v524
        %v526 = vpop.f32.mrb[0].mxu0
        %527 = vmatprep.mubr.f32.mxu0 0.0
        %528 = vmatmul.mubr.f32.gmra.mrb[0].mxu0 %v438
        %v529 = vpop.f32.mrb[0].mxu0
        %v530 = vadd.f32 %v401, %v529
        %v531 = vpop.f32.mrb[0].mxu0
        %532 = vmatprep.mubr.f32.mxu0 0.0
        %533 = vmatmul.mubr.f32.gmra.mrb[0].mxu0 %v441
        %v534 = vpop.f32.mrb[0].mxu0
        %v535 = vadd.f32 %v406, %v534
        %v536 = vpop.f32.mrb[0].mxu0
        %537 = vmatprep.mubr.f32.mxu0 0.0
        %538 = vmatmul.mubr.f32.gmra.mrb[0].mxu0 %v444
        %v539 = vpop.f32.mrb[0].mxu0
        %v540 = vadd.f32 %v411, %v539
        %v541 = vpop.f32.mrb[0].mxu0
        %542 = vmatprep.mubr.f32.mxu0 0.0
        %543 = vmatmul.mubr.f32.gmra.mrb[0].mxu0 %v447
        %v544 = vpop.f32.mrb[0].mxu0
        %v545 = vadd.f32 %v416, %v544
        %v546 = vpop.f32.mrb[0].mxu0
        %547 = vmatprep.mubr.f32.mxu0 0.0
        %548 = vmatmul.mubr.f32.gmra.mrb[0].mxu0 %v450
        %v549 = vpop.f32.mrb[0].mxu0
        %v550 = vadd.f32 %v421, %v549
        %v551 = vpop.f32.mrb[0].mxu0
        %552 = vmatprep.mubr.f32.mxu0 0.0
        %553 = vmatmul.mubr.f32.gmra.mrb[0].mxu0 %v453
        %v554 = vpop.f32.mrb[0].mxu0
        %v555 = vadd.f32 %v426, %v554
        %v556 = vpop.f32.mrb[0].mxu0
        %557 = vmatprep.mubr.f32.mxu0 0.0
        %558 = vmatmul.mubr.f32.gmra.mrb[0].mxu0 %v456
        %v559 = vpop.f32.mrb[0].mxu0
        %v560 = vadd.f32 %v431, %v559
        %v561 = vpop.f32.mrb[0].mxu0
        %562 = vdwg.mxu0
        %v563 = vmul.f32 %v525, 0.5
        %v564 = vmul.f32 %v530, 0.5
        %v565 = vmul.f32 %v535, 0.5
        %v566 = vmul.f32 %v540, 0.5
        %v567 = vmul.f32 %v545, 0.5
        %v568 = vmul.f32 %v550, 0.5
        %v569 = vmul.f32 %v555, 0.5
        %v570 = vmul.f32 %v560, 0.5
        %v571 = vmul.f32 %v525, 0.70710677
        %v572 = vmul.f32 %v530, 0.70710677
        %v573 = vmul.f32 %v535, 0.70710677
        %v574 = vmul.f32 %v540, 0.70710677
        %v575 = vmul.f32 %v545, 0.70710677
        %v576 = vmul.f32 %v550, 0.70710677
        %v577 = vmul.f32 %v555, 0.70710677
        %v578 = vmul.f32 %v560, 0.70710677
        %v579 = verf.f32.pop %v571
        %v580 = verf.f32.pop %v572
        %v581 = verf.f32.pop %v573
        %v582 = verf.f32.pop %v574
        %v583 = verf.f32.pop %v575
        %v584 = verf.f32.pop %v576
        %v585 = verf.f32.pop %v577
        %v586 = verf.f32.pop %v578
        %v587 = vadd.f32 %v579, 1.0
        %v588 = vadd.f32 %v580, 1.0
        %v589 = vadd.f32 %v581, 1.0
        %v590 = vadd.f32 %v582, 1.0
        %v591 = vadd.f32 %v583, 1.0
        %v592 = vadd.f32 %v584, 1.0
        %v593 = vadd.f32 %v585, 1.0
        %v594 = vadd.f32 %v586, 1.0
        %v595 = vmul.f32 %v563, %v587
        %v596 = vmul.f32 %v564, %v588
        %v597 = vmul.f32 %v565, %v589
        %v598 = vmul.f32 %v566, %v590
        %v599 = vmul.f32 %v567, %v591
        %v600 = vmul.f32 %v568, %v592
        %v601 = vmul.f32 %v569, %v593
        %v602 = vmul.f32 %v570, %v594
        %v603 = vld [vmem:[%s3] sm:$0xff]
        %v604 = vld [vmem:[%s3 + $0x8] sm:$0xff]
        %v605 = vld [vmem:[%s3 + $0x10] sm:$0xff]
        %v606 = vld [vmem:[%s3 + $0x18] sm:$0xff]
        %v607 = vld [vmem:[%s3 + $0x20] sm:$0xff]
        %v608 = vld [vmem:[%s3 + $0x28] sm:$0xff]
        %v609 = vld [vmem:[%s3 + $0x30] sm:$0xff]
        %v610 = vld [vmem:[%s3 + $0x38] sm:$0xff]
        %v611 = vld [vmem:[%s4] sm:$0xff]
        %v612 = vld [vmem:[%s4 + $0x8] sm:$0xff]
        %v613 = vld [vmem:[%s4 + $0x10] sm:$0xff]
        %v614 = vld [vmem:[%s4 + $0x18] sm:$0xff]
        %v615 = vld [vmem:[%s4 + $0x20] sm:$0xff]
        %v616 = vld [vmem:[%s4 + $0x28] sm:$0xff]
        %v617 = vld [vmem:[%s4 + $0x30] sm:$0xff]
        %v618 = vld [vmem:[%s4 + $0x38] sm:$0xff]
        %620 = vset.pattern.permute.xlu0 0
        %621 = vperm.xlu0 %620, %v611
        %v622 = vpop.permute.xlu0 %621
        %625 = vset.pattern.permute.xlu0 0
        %626 = vperm.xlu0 %625, %v612
        %v627 = vpop.permute.xlu0 %626
        %630 = vset.pattern.permute.xlu0 0
        %631 = vperm.xlu0 %630, %v613
        %v632 = vpop.permute.xlu0 %631
        %635 = vset.pattern.permute.xlu0 0
        %636 = vperm.xlu0 %635, %v614
        %v637 = vpop.permute.xlu0 %636
        %640 = vset.pattern.permute.xlu0 0
        %641 = vperm.xlu0 %640, %v615
        %v642 = vpop.permute.xlu0 %641
        %645 = vset.pattern.permute.xlu0 0
        %646 = vperm.xlu0 %645, %v616
        %v647 = vpop.permute.xlu0 %646
        %650 = vset.pattern.permute.xlu0 0
        %651 = vperm.xlu0 %650, %v617
        %v652 = vpop.permute.xlu0 %651
        %655 = vset.pattern.permute.xlu0 0
        %656 = vperm.xlu0 %655, %v618
        %v657 = vpop.permute.xlu0 %656
        %v660 = vsel %vm433, %v603, 0
        %v663 = vsel %vm433, %v604, 0
        %v666 = vsel %vm433, %v605, 0
        %v669 = vsel %vm433, %v606, 0
        %v672 = vsel %vm433, %v607, 0
        %v675 = vsel %vm433, %v608, 0
        %v678 = vsel %vm433, %v609, 0
        %v681 = vsel %vm433, %v610, 0
        %683 = vmatprep.subr.mxu0 0.0
        %684 = vmatpush1.msra.mxu0 %v595
        %685 = vmatprep.subr.mxu0 0.0
        %686 = vmatpush1.msra.mxu0 %v596
        %687 = vmatprep.subr.mxu0 0.0
        %688 = vmatpush1.msra.mxu0 %v597
        %689 = vmatprep.subr.mxu0 0.0
        %690 = vmatpush1.msra.mxu0 %v598
        %691 = vmatprep.subr.mxu0 0.0
        %692 = vmatpush1.msra.mxu0 %v599
        %693 = vmatprep.subr.mxu0 0.0
        %694 = vmatpush1.msra.mxu0 %v600
        %695 = vmatprep.subr.mxu0 0.0
        %696 = vmatpush1.msra.mxu0 %v601
        %697 = vmatprep.subr.mxu0 0.0
        %698 = vmatpush1.msra.mxu0 %v602
        %699 = vmatprep.subr.mxu0 0.0
        %700 = vmatpush1.msra.mxu0 0.0
        %701 = vmatprep.subr.mxu0 0.0
        %702 = vmatpush1.msra.mxu0 0.0
        %703 = vmatprep.subr.mxu0 0.0
        %704 = vmatpush1.msra.mxu0 0.0
        %705 = vmatprep.subr.mxu0 0.0
        %706 = vmatpush1.msra.mxu0 0.0
        %707 = vmatprep.subr.mxu0 0.0
        %708 = vmatpush1.msra.mxu0 0.0
        %709 = vmatprep.subr.mxu0 0.0
        %710 = vmatpush1.msra.mxu0 0.0
        %711 = vmatprep.subr.mxu0 0.0
        %712 = vmatpush1.msra.mxu0 0.0
        %713 = vmatprep.subr.mxu0 0.0
        %714 = vmatpush1.msra.mxu0 0.0
        %715 = vmatprep.subr.mxu0 0.0
        %716 = vmatpush1.msra.mxu0 0.0
        %717 = vmatprep.subr.mxu0 0.0
        %718 = vmatpush1.msra.mxu0 0.0
        %719 = vmatprep.subr.mxu0 0.0
        %720 = vmatpush1.msra.mxu0 0.0
        %721 = vmatprep.subr.mxu0 0.0
        %722 = vmatpush1.msra.mxu0 0.0
        %723 = vmatprep.subr.mxu0 0.0
        %724 = vmatpush1.msra.mxu0 0.0
        %725 = vmatprep.subr.mxu0 0.0
        %726 = vmatpush1.msra.mxu0 0.0
        %727 = vmatprep.subr.mxu0 0.0
        %728 = vmatpush1.msra.mxu0 0.0
        %729 = vmatprep.subr.mxu0 0.0
        %730 = vmatpush1.msra.mxu0 0.0
        %731 = vmatprep.subr.mxu0 0.0
        %732 = vmatpush1.msra.mxu0 0.0
        %733 = vmatprep.subr.mxu0 0.0
        %734 = vmatpush1.msra.mxu0 0.0
        %735 = vmatprep.subr.mxu0 0.0
        %736 = vmatpush1.msra.mxu0 0.0
        %737 = vmatprep.subr.mxu0 0.0
        %738 = vmatpush1.msra.mxu0 0.0
        %739 = vmatprep.subr.mxu0 0.0
        %740 = vmatpush1.msra.mxu0 0.0
        %741 = vmatprep.subr.mxu0 0.0
        %742 = vmatpush1.msra.mxu0 0.0
        %743 = vmatprep.subr.mxu0 0.0
        %744 = vmatpush1.msra.mxu0 0.0
        %745 = vmatprep.subr.mxu0 0.0
        %746 = vmatpush1.msra.mxu0 0.0
        %747 = vmatprep.mubr.f32.mxu0 0.0
        %748 = vmatmul.mubr.f32.gmra.mrb[0].mxu0 %v660
        %v749 = vpop.f32.mrb[0].mxu0
        %v750 = vadd.f32 %v622, %v749
        %v751 = vpop.f32.mrb[0].mxu0
        %752 = vmatprep.mubr.f32.mxu0 0.0
        %753 = vmatmul.mubr.f32.gmra.mrb[0].mxu0 %v663
        %v754 = vpop.f32.mrb[0].mxu0
        %v755 = vadd.f32 %v627, %v754
        %v756 = vpop.f32.mrb[0].mxu0
        %757 = vmatprep.mubr.f32.mxu0 0.0
        %758 = vmatmul.mubr.f32.gmra.mrb[0].mxu0 %v666
        %v759 = vpop.f32.mrb[0].mxu0
        %v760 = vadd.f32 %v632, %v759
        %v761 = vpop.f32.mrb[0].mxu0
        %762 = vmatprep.mubr.f32.mxu0 0.0
        %763 = vmatmul.mubr.f32.gmra.mrb[0].mxu0 %v669
        %v764 = vpop.f32.mrb[0].mxu0
        %v765 = vadd.f32 %v637, %v764
        %v766 = vpop.f32.mrb[0].mxu0
        %767 = vmatprep.mubr.f32.mxu0 0.0
        %768 = vmatmul.mubr.f32.gmra.mrb[0].mxu0 %v672
        %v769 = vpop.f32.mrb[0].mxu0
        %v770 = vadd.f32 %v642, %v769
        %v771 = vpop.f32.mrb[0].mxu0
        %772 = vmatprep.mubr.f32.mxu0 0.0
        %773 = vmatmul.mubr.f32.gmra.mrb[0].mxu0 %v675
        %v774 = vpop.f32.mrb[0].mxu0
        %v775 = vadd.f32 %v647, %v774
        %v776 = vpop.f32.mrb[0].mxu0
        %777 = vmatprep.mubr.f32.mxu0 0.0
        %778 = vmatmul.mubr.f32.gmra.mrb[0].mxu0 %v678
        %v779 = vpop.f32.mrb[0].mxu0
        %v780 = vadd.f32 %v652, %v779
        %v781 = vpop.f32.mrb[0].mxu0
        %782 = vmatprep.mubr.f32.mxu0 0.0
        %783 = vmatmul.mubr.f32.gmra.mrb[0].mxu0 %v681
        %v784 = vpop.f32.mrb[0].mxu0
        %v785 = vadd.f32 %v657, %v784
        %v786 = vpop.f32.mrb[0].mxu0
        %787 = vdwg.mxu0
        %v788 = vadd.f32 %v312, %v750
        %v789 = vadd.f32 %v313, %v755
        %v790 = vadd.f32 %v314, %v760
        %v791 = vadd.f32 %v315, %v765
        %v792 = vadd.f32 %v316, %v770
        %v793 = vadd.f32 %v317, %v775
        %v794 = vadd.f32 %v318, %v780
        %v795 = vadd.f32 %v319, %v785
        %796 = vst [vmem:[%s299] sm:$0xff] %v788
        %797 = vst [vmem:[%s299 + $0x8] sm:$0xff] %v789
        %798 = vst [vmem:[%s299 + $0x10] sm:$0xff] %v790
        %799 = vst [vmem:[%s299 + $0x18] sm:$0xff] %v791
        %800 = vst [vmem:[%s299 + $0x20] sm:$0xff] %v792
        %801 = vst [vmem:[%s299 + $0x28] sm:$0xff] %v793
        %802 = vst [vmem:[%s299 + $0x30] sm:$0xff] %v794
        %803 = vst [vmem:[%s299 + $0x38] sm:$0xff] %v795
        %v804 = vadd.f32 %v788, %v789
        %v805 = vadd.f32 %v804, %v790
        %v806 = vadd.f32 %v805, %v791
        %v807 = vadd.f32 %v806, %v792
        %v808 = vadd.f32 %v807, %v793
        %v809 = vadd.f32 %v808, %v794
        %v810 = vadd.f32 %v809, %v795
        %v811 = vrot.slane %v810, 4
        %v812 = vadd.f32 %v810, %v811
        %v813 = vrot.slane %v812, 2
        %v814 = vadd.f32 %v812, %v813
        %v815 = vrot.slane %v814, 1
        %v816 = vadd.f32 %v814, %v815
        %v817 = vmul.f32 %v816, %v333
        %v818 = vmul.f32 %v788, %v788
        %v819 = vmul.f32 %v789, %v789
        %v820 = vmul.f32 %v790, %v790
        %v821 = vmul.f32 %v791, %v791
        %v822 = vmul.f32 %v792, %v792
        %v823 = vmul.f32 %v793, %v793
        %v824 = vmul.f32 %v794, %v794
        %v825 = vmul.f32 %v795, %v795
        %v826 = vadd.f32 %v818, %v819
        %v827 = vadd.f32 %v826, %v820
        %v828 = vadd.f32 %v827, %v821
        %v829 = vadd.f32 %v828, %v822
        %v830 = vadd.f32 %v829, %v823
        %v831 = vadd.f32 %v830, %v824
        %v832 = vadd.f32 %v831, %v825
        %v833 = vrot.slane %v832, 4
        %v834 = vadd.f32 %v832, %v833
        %v835 = vrot.slane %v834, 2
        %v836 = vadd.f32 %v834, %v835
        %v837 = vrot.slane %v836, 1
        %v838 = vadd.f32 %v836, %v837
        %v839 = vmul.f32 %v838, %v333
        %840 = vst [vmem:[%s305] sm:$0x1] %v817
        %v841 = vmul.f32 %v817, %v817
        %v842 = vsub.f32 %v839, %v841
        %v843 = vadd.f32 %v842, 1e-05
        %v844 = vrsqrt.pop %v843
        %845 = vst [vmem:[%s311] sm:$0x1] %v844
        %s846 = sand.u32 %s146, 1
        %s847 = scalar_lea.sflag [#allocation4], %s846
        %s848 = sand.u32 %s146, 1
        %s849 = smul.addr %s848, 64
        %s850 = scalar_lea.vmem [#allocation5], %s849
        %s851 = sand.u32 %s28, 1
        %s852 = scalar_lea.sflag [#allocation7], %s851
        %s853 = sand.u32 %s172, 1
        %s854 = scalar_lea.vmem [#allocation6], %s853
        %s855 = sand.u32 %s28, 1
        %s856 = scalar_lea.sflag [#allocation7], %s855
        %s857 = sand.u32 %s198, 1
        %s858 = scalar_lea.vmem [#allocation8], %s857
        // Predicated region
        $region45: #{tpu_custom_call.1} parent=39 // pred_check
          %p859 = pneg %p156
        $region46: #{tpu_custom_call.1} parent=39 // pred_check_branch
          %861 = sbr.rel (%p859) target = $region48
        $region47: #{tpu_custom_call.1} parent=39 // pred_region
          %s863 = ssub.s32 1024, 1024
          %864 = vsyncadd %s847, %s863
          %s865 = smul.addr %s28, 128
          %s866 = scalar_lea.hbm %s5, %s865
          %s867 = sshll.u32 %s850, 4
          %s868 = int_to_ptr.vmem [resolvable:$true] %s867
          %873 = dma.vmem_to_hbm [thread:$0]  %s868, 1024, %s866, %s847, 128, 384, 8
        $region48: #{tpu_custom_call.1} parent=39 // pred_fallthru
          _
        // Predicated region
        $region49: #{tpu_custom_call.1} parent=39 // pred_check
          %p874 = pneg %p182
        $region50: #{tpu_custom_call.1} parent=39 // pred_check_branch
          %876 = sbr.rel (%p874) target = $region52
        $region51: #{tpu_custom_call.1} parent=39 // pred_region
          %s878 = ssub.s32 16, 16
          %879 = vsyncadd %s852, %s878
          %s880 = smul.addr %s28, 16
          %s881 = scalar_lea.hbm %s6, %s880
          %s883 = sshll.u32 %s854, 4
          %s884 = int_to_ptr.vmem [resolvable:$true] %s883
          %886 = dma.vmem_to_hbm [thread:$0]  %s884, 16, %s881, %s852
        $region52: #{tpu_custom_call.1} parent=39 // pred_fallthru
          _
        // Predicated region
        $region53: #{tpu_custom_call.1} parent=39 // pred_check
          %p887 = pneg %p208
        $region54: #{tpu_custom_call.1} parent=39 // pred_check_branch
          %889 = sbr.rel (%p887) target = $region56
        $region55: #{tpu_custom_call.1} parent=39 // pred_region
          %s891 = ssub.s32 16, 16
          %892 = vsyncadd %s856, %s891
          %s893 = smul.addr %s28, 16
          %s894 = scalar_lea.hbm %s7, %s893
          %s896 = sshll.u32 %s858, 4
          %s897 = int_to_ptr.vmem [resolvable:$true] %s896
          %899 = dma.vmem_to_hbm [thread:$0]  %s897, 16, %s894, %s856
        $region56: #{tpu_custom_call.1} parent=39 // pred_fallthru
          _
      $region40: #{tpu_custom_call.1} parent=5 // pred_fallthru
        _
      %p900 = scmp.le.s32.totalorder 2, %s23
      // Predicated region
      $region57: #{tpu_custom_call.1} parent=5 // pred_check
        %p901 = pneg %p900
      $region58: #{tpu_custom_call.1} parent=5 // pred_check_branch
        %903 = sbr.rel (%p901) target = $region60
      $region59: #{tpu_custom_call.1} parent=5 // pred_region
        %s904 = ssub.s32 %s23, 2
        // Predicated region
        $region61: #{tpu_custom_call.1} parent=59 // pred_check
          %p905 = pneg %p162
        $region62: #{tpu_custom_call.1} parent=59 // pred_check_branch
          %907 = sbr.rel (%p905) target = $region64
        $region63: #{tpu_custom_call.1} parent=59 // pred_region
          %s908 = sand.u32 %s147, 1
          %s909 = scalar_lea.sflag [#allocation4], %s908
          %s910 = sand.u32 %s147, 1
          %s911 = smul.addr %s910, 64
          %s912 = scalar_lea.vmem [#allocation5], %s911
          %913 = dma.done %s909, 1024
        $region64: #{tpu_custom_call.1} parent=59 // pred_fallthru
          _
        // Predicated region
        $region65: #{tpu_custom_call.1} parent=59 // pred_check
          %p914 = pneg %p188
        $region66: #{tpu_custom_call.1} parent=59 // pred_check_branch
          %916 = sbr.rel (%p914) target = $region68
        $region67: #{tpu_custom_call.1} parent=59 // pred_region
          %s917 = sand.u32 %s29, 1
          %s918 = scalar_lea.sflag [#allocation7], %s917
          %s919 = sand.u32 %s173, 1
          %s920 = scalar_lea.vmem [#allocation6], %s919
          %921 = dma.done %s918, 16
        $region68: #{tpu_custom_call.1} parent=59 // pred_fallthru
          _
        // Predicated region
        $region69: #{tpu_custom_call.1} parent=59 // pred_check
          %p922 = pneg %p214
        $region70: #{tpu_custom_call.1} parent=59 // pred_check_branch
          %924 = sbr.rel (%p922) target = $region72
        $region71: #{tpu_custom_call.1} parent=59 // pred_region
          %s925 = sand.u32 %s29, 1
          %s926 = scalar_lea.sflag [#allocation7], %s925
          %s927 = sand.u32 %s199, 1
          %s928 = scalar_lea.vmem [#allocation8], %s927
          %929 = dma.done %s926, 16
        $region72: #{tpu_custom_call.1} parent=59 // pred_fallthru
          _
      $region60: #{tpu_custom_call.1} parent=5 // pred_fallthru
        _
    $region6: #{tpu_custom_call.1} parent=1 // loop_footer
      %s27 = sadd.s32 1, %s23
    $region7: #{tpu_custom_call.1} parent=1 // loop_footer_branch
      %22 = sbr.rel target = $region3
    $region8: #{tpu_custom_call.1} parent=1 // loop_exit
      _
    %930 = vsyncpa [#allocation3], 1
    %s931 = scalar_lea.sflag [#allocation3], 1
    %932 = vsyncpa %s931, 1
    %933 = vsyncpa [#allocation4], 1
    %s934 = scalar_lea.sflag [#allocation4], 1
    %935 = vsyncpa %s934, 1
    %936 = vsyncpa [#allocation7], 1
    %s937 = scalar_lea.sflag [#allocation7], 1
    %938 = vsyncpa %s937, 1

</llo_original>
